<compile_context>
chip_gen: v7x
topology: tpu7x:2x2x1
jax: 0.10.0
libtpu: 0.0.40
codegen_flags: <defaults>
</compile_context>

<pallas_src>
import jax
import jax.numpy as jnp
from jax import lax
from jax.experimental import pallas as pl
from jax.experimental.pallas import tpu as pltpu

IMG_DIM = 784
LBL_DIM = 10
IN_DIM = IMG_DIM + LBL_DIM   # 794
HID = 200
OUT = 1
LN_EPS = 1e-5
LEAK = 0.02


def _disc_kernel(img_ref, lbl_ref, w1i_ref, w1l_ref, b1_ref, g_ref, beta_ref,
                 w2_ref, b2_ref, o_ref):
    # img: (TR, 784) native dtype   lbl: (TR, 10) native dtype
    # w1i: (784, 200) bf16  w1l: (10, 200) bf16   (VMEM-resident across grid steps)
    # b1 / g / beta: (1, 200) f32   w2: (1, 200) f32   b2: (1, 1) f32
    # o:   (1, 1, TR) f32  -- lane-dense output layout

    # Cast activations to bf16 in-kernel (VPU, hidden under DMA) right before the MXU.
    img = img_ref[...].astype(jnp.bfloat16)
    lbl = lbl_ref[...].astype(jnp.bfloat16)

    # Linear(794 -> 200), split into image/label contributions (no concat needed).
    h = jnp.dot(img, w1i_ref[...], preferred_element_type=jnp.float32)
    h = h + jnp.dot(lbl, w1l_ref[...], preferred_element_type=jnp.float32)
    h = h + b1_ref[...]

    # LeakyReLU(0.02)
    h = jnp.where(h >= 0.0, h, LEAK * h)

    # LayerNorm(200): one-pass statistics (E[x], E[x^2]); clamp variance >= 0.
    s1 = jnp.mean(h, axis=-1, keepdims=True)
    s2 = jnp.mean(h * h, axis=-1, keepdims=True)
    var = jnp.maximum(s2 - s1 * s1, 0.0)
    hn = (h - s1) * lax.rsqrt(var + LN_EPS)
    hn = hn * g_ref[...] + beta_ref[...]

    # Linear(200 -> 1) as (1,200) x (TR,200)^T -> (1,TR): lane-dense result, so the
    # store is a full-width vst rather than a 1/128-utilized masked store.
    y = lax.dot_general(w2_ref[...], hn,
                        dimension_numbers=(((1,), (1,)), ((), ())),
                        preferred_element_type=jnp.float32)
    y = y + b2_ref[...]

    # Sigmoid, numerically stable, via the EUP tanh path.
    o_ref[0] = 0.5 * (jnp.tanh(0.5 * y) + 1.0)


def prepare_params(params):
    """One-time conversion of torch-layout params to the kernel layout.

    Call this ONCE (outside the per-step forward) so the forward does no per-call
    weight slicing / dtype conversion passes.
    """
    w1, b1, gamma, beta, w2, b2 = params
    return (
        w1[:IMG_DIM].astype(jnp.bfloat16),          # (784, 200)
        w1[IMG_DIM:].astype(jnp.bfloat16),          # (10, 200)
        b1.reshape(1, HID).astype(jnp.float32),
        gamma.reshape(1, HID).astype(jnp.float32),
        beta.reshape(1, HID).astype(jnp.float32),
        w2.reshape(OUT, HID).astype(jnp.float32),   # (200,1) -> (1,200) row
        b2.reshape(1, 1).astype(jnp.float32),
    )


def _choose_tile(batch, row_tile):
    """Effective row tile that divides the batch when possible (avoids a pad copy)."""
    if batch <= row_tile:
        return batch
    if batch % row_tile == 0:
        return row_tile
    # Largest multiple of 8 <= row_tile that divides the batch (keeps sublane alignment).
    start = row_tile - (row_tile % 8)
    for tr in range(start, 7, -8):
        if batch % tr == 0:
            return tr
    return row_tile  # rare fallback: caller pads


def discriminator_forward(image, label, prepared_params, *, row_tile=256):
    """Forward pass.

    image: (784,) or (B, 784);  label: (10,) or (B, 10). Any float dtype (cast in-kernel).
    Returns (1,) for unbatched input (matching the PyTorch module) or (B, 1) when batched.
    """
    w1i, w1l, b1, g, beta, w2, b2 = prepared_params

    unbatched = image.ndim == 1
    if unbatched:
        image = image[None, :]
        label = label[None, :]
    B = image.shape[0]

    tr = _choose_tile(B, row_tile)
    if B % tr == 0:
        b_pad = B
    else:
        # Rare fallback for awkward batch sizes (full pad copy; avoided in common cases).
        b_pad = pl.cdiv(B, tr) * tr
        image = jnp.pad(image, ((0, b_pad - B), (0, 0)))
        label = jnp.pad(label, ((0, b_pad - B), (0, 0)))
    n_tiles = b_pad // tr

    in_specs = [
        pl.BlockSpec((tr, IMG_DIM), lambda i: (i, 0)),    # image rows (streamed, native dtype)
        pl.BlockSpec((tr, LBL_DIM), lambda i: (i, 0)),    # label rows (streamed)
        pl.BlockSpec((IMG_DIM, HID), lambda i: (0, 0)),   # w1 image block (VMEM-resident)
        pl.BlockSpec((LBL_DIM, HID), lambda i: (0, 0)),   # w1 label block (VMEM-resident)
        pl.BlockSpec((1, HID), lambda i: (0, 0)),         # b1
        pl.BlockSpec((1, HID), lambda i: (0, 0)),         # gamma
        pl.BlockSpec((1, HID), lambda i: (0, 0)),         # beta
        pl.BlockSpec((OUT, HID), lambda i: (0, 0)),       # w2 row
        pl.BlockSpec((1, 1), lambda i: (0, 0)),           # b2
    ]
    out_spec = pl.BlockSpec((1, 1, tr), lambda i: (i, 0, 0))   # lane-dense output tiles

    out = pl.pallas_call(
        _disc_kernel,
        out_shape=jax.ShapeDtypeStruct((n_tiles, 1, tr), jnp.float32),
        grid=(n_tiles,),
        in_specs=in_specs,
        out_specs=out_spec,
        compiler_params=pltpu.CompilerParams(
            dimension_semantics=("parallel",)),   # shards row tiles across v7x's 2 TCs
    )(image, label, w1i, w1l, b1, g, beta, w2, b2)

    out = out.reshape(b_pad)[:B]
    if unbatched:
        return out.reshape(OUT)   # matches PyTorch output shape (1,)
    return out.reshape(B, OUT)


def init_params(key):
    """Deterministic init mimicking torch defaults (uniform ±1/sqrt(fan_in); LN gamma=1, beta=0)."""
    k1, k2, k3, k4 = jax.random.split(key, 4)
    bound1 = 1.0 / jnp.sqrt(jnp.float32(IN_DIM))
    bound2 = 1.0 / jnp.sqrt(jnp.float32(HID))
    w1 = jax.random.uniform(k1, (IN_DIM, HID), jnp.float32, -bound1, bound1)
    b1 = jax.random.uniform(k2, (HID,), jnp.float32, -bound1, bound1)
    gamma = jnp.ones((HID,), jnp.float32)
    beta = jnp.zeros((HID,), jnp.float32)
    w2 = jax.random.uniform(k3, (HID, OUT), jnp.float32, -bound2, bound2)
    b2 = jax.random.uniform(k4, (OUT,), jnp.float32, -bound2, bound2)
    return (w1, b1, gamma, beta, w2, b2)


def _reference_forward(image, label, params):
    """Pure-JAX reference (uses the same bf16 quantization of x / w1 as the kernel matmul)."""
    w1, b1, gamma, beta, w2, b2 = params
    if image.ndim == 1:
        image = image[None, :]
        label = label[None, :]
    x = jnp.concatenate([image, label], axis=-1)
    xq = x.astype(jnp.bfloat16).astype(jnp.float32)
    w1q = w1.astype(jnp.bfloat16).astype(jnp.float32)
    h = xq @ w1q + b1.reshape(1, HID)
    h = jnp.where(h >= 0.0, h, LEAK * h)
    mean = jnp.mean(h, axis=-1, keepdims=True)
    var = jnp.mean((h - mean) ** 2, axis=-1, keepdims=True)
    h = (h - mean) / jnp.sqrt(var + LN_EPS) * gamma.reshape(1, HID) + beta.reshape(1, HID)
    y = h @ w2.reshape(HID, OUT) + b2.reshape(1, OUT)
    return jax.nn.sigmoid(y)


if __name__ == "__main__":
    key = jax.random.PRNGKey(0)
    kp, ki, kl = jax.random.split(key, 3)

    raw_params = init_params(kp)
    prepared = prepare_params(raw_params)   # one-time weight split/cast (not per call)

    # Small demo batch; feature dims (784 / 10 / 200 / 1) are fixed by the module.
    B = 16
    images = jax.random.uniform(ki, (B, IMG_DIM), jnp.float32)     # flattened MNIST images
    labels = jax.nn.one_hot(jax.random.randint(kl, (B,), 0, 10), 10).astype(jnp.float32)

    out = jax.block_until_ready(discriminator_forward(images, labels, prepared))
    ref = jax.block_until_ready(_reference_forward(images, labels, raw_params))
    assert out.shape == (B, OUT), out.shape
    assert jnp.allclose(out, ref, atol=1e-4, rtol=1e-4), (
        float(jnp.max(jnp.abs(out - ref))))

    # Unbatched path, matching the original PyTorch forward signature/shape.
    out1 = jax.block_until_ready(discriminator_forward(images[0], labels[0], prepared))
    assert out1.shape == (OUT,), out1.shape
    assert jnp.allclose(out1, ref[0], atol=1e-4, rtol=1e-4), (out1, ref[0])

    # TODO(synk): BCELoss / Adam optimizer / training loop from the PyTorch class are not
    # part of the forward pass and are left to standard JAX (not implemented as kernels).
    print("KERNEL_OK")
</pallas_src>

<mosaic_0001>
module attributes {stable_mosaic.version = 11 : i64} {
  func.func @_disc_kernel(%arg0: i32, %arg1: memref<16x784xf32, #tpu.memory_space<vmem>>, %arg2: memref<16x10xf32, #tpu.memory_space<vmem>>, %arg3: memref<784x200xbf16, #tpu.memory_space<vmem>>, %arg4: memref<10x200xbf16, #tpu.memory_space<vmem>>, %arg5: memref<1x200xf32, #tpu.memory_space<vmem>>, %arg6: memref<1x200xf32, #tpu.memory_space<vmem>>, %arg7: memref<1x200xf32, #tpu.memory_space<vmem>>, %arg8: memref<1x200xf32, #tpu.memory_space<vmem>>, %arg9: memref<1x1xf32, #tpu.memory_space<vmem>>, %arg10: memref<1x1x16xf32, #tpu.memory_space<vmem>>) attributes {dimension_semantics = [#tpu.dimension_semantics<parallel>], iteration_bounds = array<i64: 1>, scalar_prefetch = 0 : i64, scratch_operands = 0 : i64, tpu.core_type = #tpu.core_type<tc>, window_params = [{transform_indices = @transform_0, window_bounds = array<i64: 16, 784>}, {transform_indices = @transform_1, window_bounds = array<i64: 16, 10>}, {pipeline_mode = #tpu.pipeline_mode<synchronous>, transform_indices = @transform_2, window_bounds = array<i64: 784, 200>}, {pipeline_mode = #tpu.pipeline_mode<synchronous>, transform_indices = @transform_3, window_bounds = array<i64: 10, 200>}, {pipeline_mode = #tpu.pipeline_mode<synchronous>, transform_indices = @transform_4, window_bounds = array<i64: 1, 200>}, {pipeline_mode = #tpu.pipeline_mode<synchronous>, transform_indices = @transform_5, window_bounds = array<i64: 1, 200>}, {pipeline_mode = #tpu.pipeline_mode<synchronous>, transform_indices = @transform_6, window_bounds = array<i64: 1, 200>}, {pipeline_mode = #tpu.pipeline_mode<synchronous>, transform_indices = @transform_7, window_bounds = array<i64: 1, 200>}, {pipeline_mode = #tpu.pipeline_mode<synchronous>, transform_indices = @transform_8, window_bounds = array<i64: 1, 1>}, {transform_indices = @transform_9, window_bounds = array<i64: 1, 1, 16>}]} {
    %c0 = arith.constant 0 : index
    %c0_0 = arith.constant 0 : index
    %0 = vector.load %arg1[%c0, %c0_0] : memref<16x784xf32, #tpu.memory_space<vmem>>, vector<16x784xf32>
    %1 = arith.truncf %0 : vector<16x784xf32> to vector<16x784xbf16>
    %c0_1 = arith.constant 0 : index
    %c0_2 = arith.constant 0 : index
    %2 = vector.load %arg2[%c0_1, %c0_2] : memref<16x10xf32, #tpu.memory_space<vmem>>, vector<16x10xf32>
    %3 = arith.truncf %2 : vector<16x10xf32> to vector<16x10xbf16>
    %c0_3 = arith.constant 0 : index
    %c0_4 = arith.constant 0 : index
    %4 = vector.load %arg3[%c0_3, %c0_4] : memref<784x200xbf16, #tpu.memory_space<vmem>>, vector<784x200xbf16>
    %cst = arith.constant dense<0.000000e+00> : vector<16x200xf32>
    %5 = tpu.matmul %1, %4, %cst {dimension_numbers = #tpu.dot_dimension_numbers<[1], [0], [0], [1], [0, 0, 1, 1], [], []>} : vector<16x784xbf16>, vector<784x200xbf16>, vector<16x200xf32> -> vector<16x200xf32>
    %c0_5 = arith.constant 0 : index
    %c0_6 = arith.constant 0 : index
    %6 = vector.load %arg4[%c0_5, %c0_6] : memref<10x200xbf16, #tpu.memory_space<vmem>>, vector<10x200xbf16>
    %cst_7 = arith.constant dense<0.000000e+00> : vector<16x200xf32>
    %7 = tpu.matmul %3, %6, %cst_7 {dimension_numbers = #tpu.dot_dimension_numbers<[1], [0], [0], [1], [0, 0, 1, 1], [], []>} : vector<16x10xbf16>, vector<10x200xbf16>, vector<16x200xf32> -> vector<16x200xf32>
    %8 = arith.addf %5, %7 : vector<16x200xf32>
    %c0_8 = arith.constant 0 : index
    %c0_9 = arith.constant 0 : index
    %9 = vector.load %arg5[%c0_8, %c0_9] : memref<1x200xf32, #tpu.memory_space<vmem>>, vector<1x200xf32>
    %10 = vector.broadcast %9 : vector<1x200xf32> to vector<16x200xf32>
    %11 = arith.addf %8, %10 : vector<16x200xf32>
    %cst_10 = arith.constant 0.000000e+00 : f32
    %12 = vector.broadcast %cst_10 : f32 to vector<16x200xf32>
    %13 = arith.cmpf oge, %11, %12 : vector<16x200xf32>
    %cst_11 = arith.constant 2.000000e-02 : f32
    %14 = vector.broadcast %cst_11 : f32 to vector<16x200xf32>
    %15 = arith.mulf %14, %11 : vector<16x200xf32>
    %16 = arith.select %13, %11, %15 : vector<16x200xi1>, vector<16x200xf32>
    %cst_12 = arith.constant dense<0.000000e+00> : vector<16xf32>
    %17 = vector.multi_reduction <add>, %16, %cst_12 [1] : vector<16x200xf32> to vector<16xf32>
    %18 = vector.shape_cast %17 : vector<16xf32> to vector<16x1xf32>
    %cst_13 = arith.constant 2.000000e+02 : f32
    %19 = vector.broadcast %cst_13 : f32 to vector<16x1xf32>
    %20 = arith.divf %18, %19 : vector<16x1xf32>
    %21 = arith.mulf %16, %16 : vector<16x200xf32>
    %cst_14 = arith.constant dense<0.000000e+00> : vector<16xf32>
    %22 = vector.multi_reduction <add>, %21, %cst_14 [1] : vector<16x200xf32> to vector<16xf32>
    %23 = vector.shape_cast %22 : vector<16xf32> to vector<16x1xf32>
    %cst_15 = arith.constant 2.000000e+02 : f32
    %24 = vector.broadcast %cst_15 : f32 to vector<16x1xf32>
    %25 = arith.divf %23, %24 : vector<16x1xf32>
    %26 = arith.mulf %20, %20 : vector<16x1xf32>
    %27 = arith.subf %25, %26 : vector<16x1xf32>
    %cst_16 = arith.constant 0.000000e+00 : f32
    %28 = vector.broadcast %cst_16 : f32 to vector<16x1xf32>
    %29 = arith.maximumf %27, %28 : vector<16x1xf32>
    %30 = vector.broadcast %20 : vector<16x1xf32> to vector<16x200xf32>
    %31 = arith.subf %16, %30 : vector<16x200xf32>
    %cst_17 = arith.constant 9.99999974E-6 : f32
    %32 = vector.broadcast %cst_17 : f32 to vector<16x1xf32>
    %33 = arith.addf %29, %32 : vector<16x1xf32>
    %34 = math.rsqrt %33 : vector<16x1xf32>
    %35 = vector.broadcast %34 : vector<16x1xf32> to vector<16x200xf32>
    %36 = arith.mulf %31, %35 : vector<16x200xf32>
    %c0_18 = arith.constant 0 : index
    %c0_19 = arith.constant 0 : index
    %37 = vector.load %arg6[%c0_18, %c0_19] : memref<1x200xf32, #tpu.memory_space<vmem>>, vector<1x200xf32>
    %38 = vector.broadcast %37 : vector<1x200xf32> to vector<16x200xf32>
    %39 = arith.mulf %36, %38 : vector<16x200xf32>
    %c0_20 = arith.constant 0 : index
    %c0_21 = arith.constant 0 : index
    %40 = vector.load %arg7[%c0_20, %c0_21] : memref<1x200xf32, #tpu.memory_space<vmem>>, vector<1x200xf32>
    %41 = vector.broadcast %40 : vector<1x200xf32> to vector<16x200xf32>
    %42 = arith.addf %39, %41 : vector<16x200xf32>
    %c0_22 = arith.constant 0 : index
    %c0_23 = arith.constant 0 : index
    %43 = vector.load %arg8[%c0_22, %c0_23] : memref<1x200xf32, #tpu.memory_space<vmem>>, vector<1x200xf32>
    %cst_24 = arith.constant dense<0.000000e+00> : vector<1x16xf32>
    %44 = tpu.matmul %43, %42, %cst_24 {dimension_numbers = #tpu.dot_dimension_numbers<[1], [1], [0], [0], [0, 0, 1, 0], [], []>} : vector<1x200xf32>, vector<16x200xf32>, vector<1x16xf32> -> vector<1x16xf32>
    %c0_25 = arith.constant 0 : index
    %c0_26 = arith.constant 0 : index
    %45 = vector.load %arg9[%c0_25, %c0_26] : memref<1x1xf32, #tpu.memory_space<vmem>>, vector<1x1xf32>
    %46 = vector.broadcast %45 : vector<1x1xf32> to vector<1x16xf32>
    %47 = arith.addf %44, %46 : vector<1x16xf32>
    %cst_27 = arith.constant 5.000000e-01 : f32
    %48 = vector.broadcast %cst_27 : f32 to vector<1x16xf32>
    %49 = arith.mulf %48, %47 : vector<1x16xf32>
    %50 = math.tanh %49 : vector<1x16xf32>
    %cst_28 = arith.constant 1.000000e+00 : f32
    %51 = vector.broadcast %cst_28 : f32 to vector<1x16xf32>
    %52 = arith.addf %50, %51 : vector<1x16xf32>
    %cst_29 = arith.constant 5.000000e-01 : f32
    %53 = vector.broadcast %cst_29 : f32 to vector<1x16xf32>
    %54 = arith.mulf %53, %52 : vector<1x16xf32>
    %c0_30 = arith.constant 0 : index
    %c0_31 = arith.constant 0 : index
    %c0_32 = arith.constant 0 : index
    %55 = vector.load %arg10[%c0_30, %c0_31, %c0_32] : memref<1x1x16xf32, #tpu.memory_space<vmem>>, vector<1x1x16xf32>
    %56 = vector.shape_cast %55 : vector<1x1x16xf32> to vector<1x16xf32>
    %57 = vector.shape_cast %54 : vector<1x16xf32> to vector<1x1x16xf32>
    tpu.vector_store %arg10[%c0_30, %c0_31, %c0_32], %57 {strides = array<i32>} : memref<1x1x16xf32, #tpu.memory_space<vmem>>, vector<1x1x16xf32>,
    return
  }
  func.func @transform_0(%arg0: i32) -> (i32, i32) {
    %c0_i32 = arith.constant 0 : i32
    %c0_i32_0 = arith.constant 0 : i32
    return %arg0, %c0_i32 : i32, i32
  }
  func.func @transform_1(%arg0: i32) -> (i32, i32) {
    %c0_i32 = arith.constant 0 : i32
    %c0_i32_0 = arith.constant 0 : i32
    return %arg0, %c0_i32 : i32, i32
  }
  func.func @transform_2(%arg0: i32) -> (i32, i32) {
    %c0_i32 = arith.constant 0 : i32
    %c0_i32_0 = arith.constant 0 : i32
    %c0_i32_1 = arith.constant 0 : i32
    return %c0_i32, %c0_i32_0 : i32, i32
  }
  func.func @transform_3(%arg0: i32) -> (i32, i32) {
    %c0_i32 = arith.constant 0 : i32
    %c0_i32_0 = arith.constant 0 : i32
    %c0_i32_1 = arith.constant 0 : i32
    return %c0_i32, %c0_i32_0 : i32, i32
  }
  func.func @transform_4(%arg0: i32) -> (i32, i32) {
    %c0_i32 = arith.constant 0 : i32
    %c0_i32_0 = arith.constant 0 : i32
    %c0_i32_1 = arith.constant 0 : i32
    return %c0_i32, %c0_i32_0 : i32, i32
  }
  func.func @transform_5(%arg0: i32) -> (i32, i32) {
    %c0_i32 = arith.constant 0 : i32
    %c0_i32_0 = arith.constant 0 : i32
    %c0_i32_1 = arith.constant 0 : i32
    return %c0_i32, %c0_i32_0 : i32, i32
  }
  func.func @transform_6(%arg0: i32) -> (i32, i32) {
    %c0_i32 = arith.constant 0 : i32
    %c0_i32_0 = arith.constant 0 : i32
    %c0_i32_1 = arith.constant 0 : i32
    return %c0_i32, %c0_i32_0 : i32, i32
  }
  func.func @transform_7(%arg0: i32) -> (i32, i32) {
    %c0_i32 = arith.constant 0 : i32
    %c0_i32_0 = arith.constant 0 : i32
    %c0_i32_1 = arith.constant 0 : i32
    return %c0_i32, %c0_i32_0 : i32, i32
  }
  func.func @transform_8(%arg0: i32) -> (i32, i32) {
    %c0_i32 = arith.constant 0 : i32
    %c0_i32_0 = arith.constant 0 : i32
    %c0_i32_1 = arith.constant 0 : i32
    return %c0_i32, %c0_i32_0 : i32, i32
  }
  func.func @transform_9(%arg0: i32) -> (i32, i32, i32) {
    %c0_i32 = arith.constant 0 : i32
    %c0_i32_0 = arith.constant 0 : i32
    %c0_i32_1 = arith.constant 0 : i32
    return %arg0, %c0_i32, %c0_i32_0 : i32, i32, i32
  }
}

</mosaic_0001>

<llo_original>
// kernel: tpu_custom_call.1
$region0: #{tpu_custom_call.1}
  #allocation0 [shape = 'u32[]', space=smem, size = 0x4, offset = 0x4, fixed_abs, tag = 'smem constant byte address 0x4 - core index']
  #allocation1 [shape = 'u32[144,128]{1,0:T(1,128)}', space=vmem, size = 0x12000, scoped, tag = 'internal scratch']
  #allocation2 [shape = 'f32[1,1]{1,0:T(1,128)S(1)}', space=vmem, size = 0x200, scoped, tag = 'scoped memory for tpu_custom_call.1']
  %s0 = inlined_call_operand.vmem [shape: f32[16,784], index: 0, kind: input, shape index: {}]
  %s1 = inlined_call_operand.vmem [shape: f32[16,10], index: 1, kind: input, shape index: {}]
  %s2 = inlined_call_operand.vmem [shape: bf16[784,200], index: 2, kind: input, shape index: {}]
  %s3 = inlined_call_operand.vmem [shape: bf16[10,200], index: 3, kind: input, shape index: {}]
  %s4 = inlined_call_operand.vmem [shape: f32[1,200], index: 4, kind: input, shape index: {}]
  %s5 = inlined_call_operand.vmem [shape: f32[1,200], index: 5, kind: input, shape index: {}]
  %s6 = inlined_call_operand.vmem [shape: f32[1,200], index: 6, kind: input, shape index: {}]
  %s7 = inlined_call_operand.vmem [shape: f32[1,200], index: 7, kind: input, shape index: {}]
  %s8 = inlined_call_operand.<no memory space> [shape: f32[1,1], index: 8, kind: input, shape index: {}]
  %s9 = inlined_call_operand.hbm [shape: f32[1,1,16], index: 9, kind: output, shape index: {}]
  %s10 = sld [smem:[#allocation0]]
  $region46: #{tpu_custom_call.1} parent=0
    _
  %s12 = ssub.s32 1, %s10
  %s13 = scalar_select 0, %s12, %s10
  %v14 = vstv %s8
  %15 = vst [vmem:[#allocation2] sm:$0x1] %v14
  $region1: #{tpu_custom_call.1} parent=0
    #allocation3 [shape = 'u8[512]{0}', space=vmem, size = 0x400, scoped, tag = 'output window, operand 0, single buffered']
    #allocation4 [shape = 's32[1]{0}', space=sflag, size = 0x4, scoped, tag = 'scoped memory for tpu_custom_call.1']
    %16 = vsyncpa [#allocation4], 0
    // Predicated region
    $region2: #{tpu_custom_call.1} parent=1 // pred_check
      _
    $region3: #{tpu_custom_call.1} parent=1 // pred_check_branch
      %18 = sbr.rel (0) target = $region5
    $region4: #{tpu_custom_call.1} parent=1 // pred_region
      _
    $region5: #{tpu_custom_call.1} parent=1 // pred_fallthru
      _
    // Predicated region
    $region6: #{tpu_custom_call.1} parent=1 // pred_check
      _
    $region7: #{tpu_custom_call.1} parent=1 // pred_check_branch
      %20 = sbr.rel (0) target = $region9
    $region8: #{tpu_custom_call.1} parent=1 // pred_region
      _
    $region9: #{tpu_custom_call.1} parent=1 // pred_fallthru
      _
    // Predicated region
    $region10: #{tpu_custom_call.1} parent=1 // pred_check
      _
    $region11: #{tpu_custom_call.1} parent=1 // pred_check_branch
      %22 = sbr.rel (0) target = $region13
    $region12: #{tpu_custom_call.1} parent=1 // pred_region
      _
    $region13: #{tpu_custom_call.1} parent=1 // pred_fallthru
      _
    // Predicated region
    $region14: #{tpu_custom_call.1} parent=1 // pred_check
      _
    $region15: #{tpu_custom_call.1} parent=1 // pred_check_branch
      %24 = sbr.rel (0) target = $region17
    $region16: #{tpu_custom_call.1} parent=1 // pred_region
      _
    $region17: #{tpu_custom_call.1} parent=1 // pred_fallthru
      _
    // Predicated region
    $region18: #{tpu_custom_call.1} parent=1 // pred_check
      _
    $region19: #{tpu_custom_call.1} parent=1 // pred_check_branch
      %26 = sbr.rel (0) target = $region21
    $region20: #{tpu_custom_call.1} parent=1 // pred_region
      _
    $region21: #{tpu_custom_call.1} parent=1 // pred_fallthru
      _
    // Predicated region
    $region22: #{tpu_custom_call.1} parent=1 // pred_check
      _
    $region23: #{tpu_custom_call.1} parent=1 // pred_check_branch
      %28 = sbr.rel (0) target = $region25
    $region24: #{tpu_custom_call.1} parent=1 // pred_region
      _
    $region25: #{tpu_custom_call.1} parent=1 // pred_fallthru
      _
    // Predicated region
    $region26: #{tpu_custom_call.1} parent=1 // pred_check
      _
    $region27: #{tpu_custom_call.1} parent=1 // pred_check_branch
      %30 = sbr.rel (0) target = $region29
    $region28: #{tpu_custom_call.1} parent=1 // pred_region
      _
    $region29: #{tpu_custom_call.1} parent=1 // pred_fallthru
      _
    // Predicated region
    $region30: #{tpu_custom_call.1} parent=1 // pred_check
      _
    $region31: #{tpu_custom_call.1} parent=1 // pred_check_branch
      %32 = sbr.rel (0) target = $region33
    $region32: #{tpu_custom_call.1} parent=1 // pred_region
      _
    $region33: #{tpu_custom_call.1} parent=1 // pred_fallthru
      _
    // Predicated region
    $region34: #{tpu_custom_call.1} parent=1 // pred_check
      _
    $region35: #{tpu_custom_call.1} parent=1 // pred_check_branch
      %34 = sbr.rel (0) target = $region37
    $region36: #{tpu_custom_call.1} parent=1 // pred_region
      _
    $region37: #{tpu_custom_call.1} parent=1 // pred_fallthru
      _
    %v36 = vld [vmem:[%s0] sm:$0xff]
    %v37 = vld [vmem:[%s0 + $0x8] sm:$0xff]
    %v38 = vld [vmem:[%s0 + $0x10] sm:$0xff]
    %v39 = vld [vmem:[%s0 + $0x18] sm:$0xff]
    %v40 = vld [vmem:[%s0 + $0x20] sm:$0xff]
    %v41 = vld [vmem:[%s0 + $0x28] sm:$0xff]
    %v42 = vld [vmem:[%s0 + $0x30] sm:$0xff]
    %v43 = vld [vmem:[%s0 + $0x38] sm:$0xff]
    %v44 = vld [vmem:[%s0 + $0x40] sm:$0xff]
    %v45 = vld [vmem:[%s0 + $0x48] sm:$0xff]
    %v46 = vld [vmem:[%s0 + $0x50] sm:$0xff]
    %v47 = vld [vmem:[%s0 + $0x58] sm:$0xff]
    %v48 = vld [vmem:[%s0 + $0x60] sm:$0xff]
    %v49 = vld [vmem:[%s0 + $0x68] sm:$0xff]
    %v50 = vpack.c.bf16 %v43, %v36
    %v51 = vpack.c.bf16 %v44, %v37
    %v52 = vpack.c.bf16 %v45, %v38
    %v53 = vpack.c.bf16 %v46, %v39
    %v54 = vpack.c.bf16 %v47, %v40
    %v55 = vpack.c.bf16 %v48, %v41
    %v56 = vpack.c.bf16 %v49, %v42
    %v57 = vld [vmem:[%s1] sm:$0xff]
    %v58 = vld [vmem:[%s1 + $0x8] sm:$0xff]
    %v59 = vpack.c.bf16 %v58, %v57
    %v60 = vld [vmem:[%s2] sm:$0xff]
    %v61 = vld [vmem:[%s2 + $0x8] sm:$0xff]
    %v62 = vld [vmem:[%s2 + $0x10] sm:$0xff]
    %v63 = vld [vmem:[%s2 + $0x18] sm:$0xff]
    %v64 = vld [vmem:[%s2 + $0x20] sm:$0xff]
    %v65 = vld [vmem:[%s2 + $0x28] sm:$0xff]
    %v66 = vld [vmem:[%s2 + $0x30] sm:$0xff]
    %v67 = vld [vmem:[%s2 + $0x38] sm:$0xff]
    %v68 = vld [vmem:[%s2 + $0x40] sm:$0xff]
    %v69 = vld [vmem:[%s2 + $0x48] sm:$0xff]
    %v70 = vld [vmem:[%s2 + $0x50] sm:$0xff]
    %v71 = vld [vmem:[%s2 + $0x58] sm:$0xff]
    %v72 = vld [vmem:[%s2 + $0x60] sm:$0xff]
    %v73 = vld [vmem:[%s2 + $0x68] sm:$0xff]
    %v74 = vld [vmem:[%s2 + $0x70] sm:$0xff]
    %v75 = vld [vmem:[%s2 + $0x78] sm:$0xff]
    %v76 = vld [vmem:[%s2 + $0x80] sm:$0xff]
    %v77 = vld [vmem:[%s2 + $0x88] sm:$0xff]
    %v78 = vld [vmem:[%s2 + $0x90] sm:$0xff]
    %v79 = vld [vmem:[%s2 + $0x98] sm:$0xff]
    %v80 = vld [vmem:[%s2 + $0xa0] sm:$0xff]
    %v81 = vld [vmem:[%s2 + $0xa8] sm:$0xff]
    %v82 = vld [vmem:[%s2 + $0xb0] sm:$0xff]
    %v83 = vld [vmem:[%s2 + $0xb8] sm:$0xff]
    %v84 = vld [vmem:[%s2 + $0xc0] sm:$0xff]
    %v85 = vld [vmem:[%s2 + $0xc8] sm:$0xff]
    %v86 = vld [vmem:[%s2 + $0xd0] sm:$0xff]
    %v87 = vld [vmem:[%s2 + $0xd8] sm:$0xff]
    %v88 = vld [vmem:[%s2 + $0xe0] sm:$0xff]
    %v89 = vld [vmem:[%s2 + $0xe8] sm:$0xff]
    %v90 = vld [vmem:[%s2 + $0xf0] sm:$0xff]
    %v91 = vld [vmem:[%s2 + $0xf8] sm:$0xff]
    %v92 = vld [vmem:[%s2 + $0x100] sm:$0xff]
    %v93 = vld [vmem:[%s2 + $0x108] sm:$0xff]
    %v94 = vld [vmem:[%s2 + $0x110] sm:$0xff]
    %v95 = vld [vmem:[%s2 + $0x118] sm:$0xff]
    %v96 = vld [vmem:[%s2 + $0x120] sm:$0xff]
    %v97 = vld [vmem:[%s2 + $0x128] sm:$0xff]
    %v98 = vld [vmem:[%s2 + $0x130] sm:$0xff]
    %v99 = vld [vmem:[%s2 + $0x138] sm:$0xff]
    %v100 = vld [vmem:[%s2 + $0x140] sm:$0xff]
    %v101 = vld [vmem:[%s2 + $0x148] sm:$0xff]
    %v102 = vld [vmem:[%s2 + $0x150] sm:$0xff]
    %v103 = vld [vmem:[%s2 + $0x158] sm:$0xff]
    %v104 = vld [vmem:[%s2 + $0x160] sm:$0xff]
    %v105 = vld [vmem:[%s2 + $0x168] sm:$0xff]
    %v106 = vld [vmem:[%s2 + $0x170] sm:$0xff]
    %v107 = vld [vmem:[%s2 + $0x178] sm:$0xff]
    %v108 = vld [vmem:[%s2 + $0x180] sm:$0xff]
    %v109 = vld [vmem:[%s2 + $0x188] sm:$0xff]
    %v110 = vld [vmem:[%s2 + $0x190] sm:$0xff]
    %v111 = vld [vmem:[%s2 + $0x198] sm:$0xff]
    %v112 = vld [vmem:[%s2 + $0x1a0] sm:$0xff]
    %v113 = vld [vmem:[%s2 + $0x1a8] sm:$0xff]
    %v114 = vld [vmem:[%s2 + $0x1b0] sm:$0xff]
    %v115 = vld [vmem:[%s2 + $0x1b8] sm:$0xff]
    %v116 = vld [vmem:[%s2 + $0x1c0] sm:$0xff]
    %v117 = vld [vmem:[%s2 + $0x1c8] sm:$0xff]
    %v118 = vld [vmem:[%s2 + $0x1d0] sm:$0xff]
    %v119 = vld [vmem:[%s2 + $0x1d8] sm:$0xff]
    %v120 = vld [vmem:[%s2 + $0x1e0] sm:$0xff]
    %v121 = vld [vmem:[%s2 + $0x1e8] sm:$0xff]
    %v122 = vld [vmem:[%s2 + $0x1f0] sm:$0xff]
    %v123 = vld [vmem:[%s2 + $0x1f8] sm:$0xff]
    %v124 = vld [vmem:[%s2 + $0x200] sm:$0xff]
    %v125 = vld [vmem:[%s2 + $0x208] sm:$0xff]
    %v126 = vld [vmem:[%s2 + $0x210] sm:$0xff]
    %v127 = vld [vmem:[%s2 + $0x218] sm:$0xff]
    %v128 = vld [vmem:[%s2 + $0x220] sm:$0xff]
    %v129 = vld [vmem:[%s2 + $0x228] sm:$0xff]
    %v130 = vld [vmem:[%s2 + $0x230] sm:$0xff]
    %v131 = vld [vmem:[%s2 + $0x238] sm:$0xff]
    %v132 = vld [vmem:[%s2 + $0x240] sm:$0xff]
    %v133 = vld [vmem:[%s2 + $0x248] sm:$0xff]
    %v134 = vld [vmem:[%s2 + $0x250] sm:$0xff]
    %v135 = vld [vmem:[%s2 + $0x258] sm:$0xff]
    %v136 = vld [vmem:[%s2 + $0x260] sm:$0xff]
    %v137 = vld [vmem:[%s2 + $0x268] sm:$0xff]
    %v138 = vld [vmem:[%s2 + $0x270] sm:$0xff]
    %v139 = vld [vmem:[%s2 + $0x278] sm:$0xff]
    %v140 = vld [vmem:[%s2 + $0x280] sm:$0xff]
    %v141 = vld [vmem:[%s2 + $0x288] sm:$0xff]
    %v142 = vld [vmem:[%s2 + $0x290] sm:$0xff]
    %v143 = vld [vmem:[%s2 + $0x298] sm:$0xff]
    %v144 = vld [vmem:[%s2 + $0x2a0] sm:$0xff]
    %v145 = vld [vmem:[%s2 + $0x2a8] sm:$0xff]
    %v146 = vld [vmem:[%s2 + $0x2b0] sm:$0xff]
    %v147 = vld [vmem:[%s2 + $0x2b8] sm:$0xff]
    %v148 = vld [vmem:[%s2 + $0x2c0] sm:$0xff]
    %v149 = vld [vmem:[%s2 + $0x2c8] sm:$0xff]
    %v150 = vld [vmem:[%s2 + $0x2d0] sm:$0xff]
    %v151 = vld [vmem:[%s2 + $0x2d8] sm:$0xff]
    %v152 = vld [vmem:[%s2 + $0x2e0] sm:$0xff]
    %v153 = vld [vmem:[%s2 + $0x2e8] sm:$0xff]
    %v154 = vld [vmem:[%s2 + $0x2f0] sm:$0xff]
    %v155 = vld [vmem:[%s2 + $0x2f8] sm:$0xff]
    %v156 = vld [vmem:[%s2 + $0x300] sm:$0xff]
    %v157 = vld [vmem:[%s2 + $0x308] sm:$0xff]
    %v158 = vld [vmem:[%s3] sm:$0xff]
    %v159 = vld [vmem:[%s3 + $0x8] sm:$0x11]
    %v162 = vunpack.c.l.b16 %v158
    %v163 = vunpack.c.h.b16 %v158
    %v164 = vunpack.c.l.b16 %v159
    %v165 = vunpack.c.h.b16 %v159
    %v166 = vpack.c.b16 %v164, %v162
    %v167 = vpack.c.b16 %v165, %v163
    %vm168 = vcmask 80896
    %v170 = vsel %vm168, %v59, 0
    %vm172 = vcmask 1044480
    %v174 = vsel %vm172, %v166, 0
    %v177 = vsel %vm172, %v167, 0
    %179 = vmatprep.subr.bf16.mxu0 %v177
    %180 = vmatpush1.bf16.msra.mxu0 %v174
    %181 = vmatprep.subr.bf16.mxu0 0
    %182 = vmatpush1.bf16.msra.mxu0 0
    %183 = vmatprep.subr.bf16.mxu0 0
    %184 = vmatpush1.bf16.msra.mxu0 0
    %185 = vmatprep.subr.bf16.mxu0 0
    %186 = vmatpush1.bf16.msra.mxu0 0
    %187 = vmatprep.subr.bf16.mxu0 0
    %188 = vmatpush1.bf16.msra.mxu0 0
    %189 = vmatprep.subr.bf16.mxu0 0
    %190 = vmatpush1.bf16.msra.mxu0 0
    %191 = vmatprep.subr.bf16.mxu0 0
    %192 = vmatpush1.bf16.msra.mxu0 0
    %193 = vmatprep.subr.bf16.mxu0 0
    %194 = vmatpush1.bf16.msra.mxu0 0
    %195 = vmatprep.subr.bf16.mxu0 0
    %196 = vmatpush1.bf16.msra.mxu0 0
    %197 = vmatprep.subr.bf16.mxu0 0
    %198 = vmatpush1.bf16.msra.mxu0 0
    %199 = vmatprep.subr.bf16.mxu0 0
    %200 = vmatpush1.bf16.msra.mxu0 0
    %201 = vmatprep.subr.bf16.mxu0 0
    %202 = vmatpush1.bf16.msra.mxu0 0
    %203 = vmatprep.subr.bf16.mxu0 0
    %204 = vmatpush1.bf16.msra.mxu0 0
    %205 = vmatprep.subr.bf16.mxu0 0
    %206 = vmatpush1.bf16.msra.mxu0 0
    %207 = vmatprep.subr.bf16.mxu0 0
    %208 = vmatpush1.bf16.msra.mxu0 0
    %209 = vmatprep.subr.bf16.mxu0 0
    %210 = vmatpush1.bf16.msra.mxu0 0
    %211 = vmatprep.mubr.bf16.mxu0 0
    %212 = vmatmul.mubr.bf16.gmra.mrb[0].mxu0 %v170
    %v213 = vpop.f32.mrb[0].mxu0
    %v214 = vadd.f32 0.0, %v213
    %v215 = vpop.f32.mrb[0].mxu0
    %v216 = vadd.f32 0.0, %v215
    %v217 = vpop.f32.mrb[0].mxu0
    %v218 = vadd.f32 0.0, %v217
    %v219 = vpop.f32.mrb[0].mxu0
    %v220 = vadd.f32 0.0, %v219
    %221 = vdwg.mxu0
    %v320 = vunpack.c.l.b16 %v60
    %v321 = vunpack.c.h.b16 %v60
    %v322 = vunpack.c.l.b16 %v61
    %v323 = vunpack.c.h.b16 %v61
    %v324 = vunpack.c.l.b16 %v62
    %v325 = vunpack.c.h.b16 %v62
    %v326 = vunpack.c.l.b16 %v63
    %v327 = vunpack.c.h.b16 %v63
    %v328 = vunpack.c.l.b16 %v64
    %v329 = vunpack.c.h.b16 %v64
    %v330 = vunpack.c.l.b16 %v65
    %v331 = vunpack.c.h.b16 %v65
    %v332 = vunpack.c.l.b16 %v66
    %v333 = vunpack.c.h.b16 %v66
    %v334 = vunpack.c.l.b16 %v67
    %v335 = vunpack.c.h.b16 %v67
    %v336 = vunpack.c.l.b16 %v68
    %v337 = vunpack.c.h.b16 %v68
    %v338 = vunpack.c.l.b16 %v69
    %v339 = vunpack.c.h.b16 %v69
    %v340 = vunpack.c.l.b16 %v70
    %v341 = vunpack.c.h.b16 %v70
    %v342 = vunpack.c.l.b16 %v71
    %v343 = vunpack.c.h.b16 %v71
    %v344 = vunpack.c.l.b16 %v72
    %v345 = vunpack.c.h.b16 %v72
    %v346 = vunpack.c.l.b16 %v73
    %v347 = vunpack.c.h.b16 %v73
    %v348 = vunpack.c.l.b16 %v74
    %v349 = vunpack.c.h.b16 %v74
    %v350 = vunpack.c.l.b16 %v75
    %v351 = vunpack.c.h.b16 %v75
    %v352 = vunpack.c.l.b16 %v76
    %v353 = vunpack.c.h.b16 %v76
    %v354 = vunpack.c.l.b16 %v77
    %v355 = vunpack.c.h.b16 %v77
    %v356 = vunpack.c.l.b16 %v78
    %v357 = vunpack.c.h.b16 %v78
    %v358 = vunpack.c.l.b16 %v79
    %v359 = vunpack.c.h.b16 %v79
    %v360 = vunpack.c.l.b16 %v80
    %v361 = vunpack.c.h.b16 %v80
    %v362 = vunpack.c.l.b16 %v81
    %v363 = vunpack.c.h.b16 %v81
    %v364 = vunpack.c.l.b16 %v82
    %v365 = vunpack.c.h.b16 %v82
    %v366 = vunpack.c.l.b16 %v83
    %v367 = vunpack.c.h.b16 %v83
    %v368 = vunpack.c.l.b16 %v84
    %v369 = vunpack.c.h.b16 %v84
    %v370 = vunpack.c.l.b16 %v85
    %v371 = vunpack.c.h.b16 %v85
    %v372 = vunpack.c.l.b16 %v86
    %v373 = vunpack.c.h.b16 %v86
    %v374 = vunpack.c.l.b16 %v87
    %v375 = vunpack.c.h.b16 %v87
    %v376 = vunpack.c.l.b16 %v88
    %v377 = vunpack.c.h.b16 %v88
    %v378 = vunpack.c.l.b16 %v89
    %v379 = vunpack.c.h.b16 %v89
    %v380 = vunpack.c.l.b16 %v90
    %v381 = vunpack.c.h.b16 %v90
    %v382 = vunpack.c.l.b16 %v91
    %v383 = vunpack.c.h.b16 %v91
    %v384 = vunpack.c.l.b16 %v92
    %v385 = vunpack.c.h.b16 %v92
    %v386 = vunpack.c.l.b16 %v93
    %v387 = vunpack.c.h.b16 %v93
    %v388 = vunpack.c.l.b16 %v94
    %v389 = vunpack.c.h.b16 %v94
    %v390 = vunpack.c.l.b16 %v95
    %v391 = vunpack.c.h.b16 %v95
    %v392 = vunpack.c.l.b16 %v96
    %v393 = vunpack.c.h.b16 %v96
    %v394 = vunpack.c.l.b16 %v97
    %v395 = vunpack.c.h.b16 %v97
    %v396 = vunpack.c.l.b16 %v98
    %v397 = vunpack.c.h.b16 %v98
    %v398 = vunpack.c.l.b16 %v99
    %v399 = vunpack.c.h.b16 %v99
    %v400 = vunpack.c.l.b16 %v100
    %v401 = vunpack.c.h.b16 %v100
    %v402 = vunpack.c.l.b16 %v101
    %v403 = vunpack.c.h.b16 %v101
    %v404 = vunpack.c.l.b16 %v102
    %v405 = vunpack.c.h.b16 %v102
    %v406 = vunpack.c.l.b16 %v103
    %v407 = vunpack.c.h.b16 %v103
    %v408 = vunpack.c.l.b16 %v104
    %v409 = vunpack.c.h.b16 %v104
    %v410 = vunpack.c.l.b16 %v105
    %v411 = vunpack.c.h.b16 %v105
    %v412 = vunpack.c.l.b16 %v106
    %v413 = vunpack.c.h.b16 %v106
    %v414 = vunpack.c.l.b16 %v107
    %v415 = vunpack.c.h.b16 %v107
    %v416 = vunpack.c.l.b16 %v108
    %v417 = vunpack.c.h.b16 %v108
    %v418 = vunpack.c.l.b16 %v109
    %v419 = vunpack.c.h.b16 %v109
    %v420 = vunpack.c.l.b16 %v110
    %v421 = vunpack.c.h.b16 %v110
    %v422 = vunpack.c.l.b16 %v111
    %v423 = vunpack.c.h.b16 %v111
    %v424 = vunpack.c.l.b16 %v112
    %v425 = vunpack.c.h.b16 %v112
    %v426 = vunpack.c.l.b16 %v113
    %v427 = vunpack.c.h.b16 %v113
    %v428 = vunpack.c.l.b16 %v114
    %v429 = vunpack.c.h.b16 %v114
    %v430 = vunpack.c.l.b16 %v115
    %v431 = vunpack.c.h.b16 %v115
    %v432 = vunpack.c.l.b16 %v116
    %v433 = vunpack.c.h.b16 %v116
    %v434 = vunpack.c.l.b16 %v117
    %v435 = vunpack.c.h.b16 %v117
    %v436 = vunpack.c.l.b16 %v118
    %v437 = vunpack.c.h.b16 %v118
    %v438 = vunpack.c.l.b16 %v119
    %v439 = vunpack.c.h.b16 %v119
    %v440 = vunpack.c.l.b16 %v120
    %v441 = vunpack.c.h.b16 %v120
    %v442 = vunpack.c.l.b16 %v121
    %v443 = vunpack.c.h.b16 %v121
    %v444 = vunpack.c.l.b16 %v122
    %v445 = vunpack.c.h.b16 %v122
    %v446 = vunpack.c.l.b16 %v123
    %v447 = vunpack.c.h.b16 %v123
    %v448 = vunpack.c.l.b16 %v124
    %v449 = vunpack.c.h.b16 %v124
    %v450 = vunpack.c.l.b16 %v125
    %v451 = vunpack.c.h.b16 %v125
    %v452 = vunpack.c.l.b16 %v126
    %v453 = vunpack.c.h.b16 %v126
    %v454 = vunpack.c.l.b16 %v127
    %v455 = vunpack.c.h.b16 %v127
    %v456 = vunpack.c.l.b16 %v128
    %v457 = vunpack.c.h.b16 %v128
    %v458 = vunpack.c.l.b16 %v129
    %v459 = vunpack.c.h.b16 %v129
    %v460 = vunpack.c.l.b16 %v130
    %v461 = vunpack.c.h.b16 %v130
    %v462 = vunpack.c.l.b16 %v131
    %v463 = vunpack.c.h.b16 %v131
    %v464 = vunpack.c.l.b16 %v132
    %v465 = vunpack.c.h.b16 %v132
    %v466 = vunpack.c.l.b16 %v133
    %v467 = vunpack.c.h.b16 %v133
    %v468 = vunpack.c.l.b16 %v134
    %v469 = vunpack.c.h.b16 %v134
    %v470 = vunpack.c.l.b16 %v135
    %v471 = vunpack.c.h.b16 %v135
    %v472 = vunpack.c.l.b16 %v136
    %v473 = vunpack.c.h.b16 %v136
    %v474 = vunpack.c.l.b16 %v137
    %v475 = vunpack.c.h.b16 %v137
    %v476 = vunpack.c.l.b16 %v138
    %v477 = vunpack.c.h.b16 %v138
    %v478 = vunpack.c.l.b16 %v139
    %v479 = vunpack.c.h.b16 %v139
    %v480 = vunpack.c.l.b16 %v140
    %v481 = vunpack.c.h.b16 %v140
    %v482 = vunpack.c.l.b16 %v141
    %v483 = vunpack.c.h.b16 %v141
    %v484 = vunpack.c.l.b16 %v142
    %v485 = vunpack.c.h.b16 %v142
    %v486 = vunpack.c.l.b16 %v143
    %v487 = vunpack.c.h.b16 %v143
    %v488 = vunpack.c.l.b16 %v144
    %v489 = vunpack.c.h.b16 %v144
    %v490 = vunpack.c.l.b16 %v145
    %v491 = vunpack.c.h.b16 %v145
    %v492 = vunpack.c.l.b16 %v146
    %v493 = vunpack.c.h.b16 %v146
    %v494 = vunpack.c.l.b16 %v147
    %v495 = vunpack.c.h.b16 %v147
    %v496 = vunpack.c.l.b16 %v148
    %v497 = vunpack.c.h.b16 %v148
    %v498 = vunpack.c.l.b16 %v149
    %v499 = vunpack.c.h.b16 %v149
    %v500 = vunpack.c.l.b16 %v150
    %v501 = vunpack.c.h.b16 %v150
    %v502 = vunpack.c.l.b16 %v151
    %v503 = vunpack.c.h.b16 %v151
    %v504 = vunpack.c.l.b16 %v152
    %v505 = vunpack.c.h.b16 %v152
    %v506 = vunpack.c.l.b16 %v153
    %v507 = vunpack.c.h.b16 %v153
    %v508 = vunpack.c.l.b16 %v154
    %v509 = vunpack.c.h.b16 %v154
    %v510 = vunpack.c.l.b16 %v155
    %v511 = vunpack.c.h.b16 %v155
    %v512 = vunpack.c.l.b16 %v156
    %v513 = vunpack.c.h.b16 %v156
    %v514 = vunpack.c.l.b16 %v157
    %v515 = vunpack.c.h.b16 %v157
    %v516 = vpack.c.b16 %v322, %v320
    %v517 = vpack.c.b16 %v323, %v321
    %v518 = vpack.c.b16 %v326, %v324
    %v519 = vpack.c.b16 %v327, %v325
    %v520 = vpack.c.b16 %v330, %v328
    %v521 = vpack.c.b16 %v331, %v329
    %v522 = vpack.c.b16 %v334, %v332
    %v523 = vpack.c.b16 %v335, %v333
    %v524 = vpack.c.b16 %v338, %v336
    %v525 = vpack.c.b16 %v339, %v337
    %v526 = vpack.c.b16 %v342, %v340
    %v527 = vpack.c.b16 %v343, %v341
    %v528 = vpack.c.b16 %v346, %v344
    %v529 = vpack.c.b16 %v347, %v345
    %v530 = vpack.c.b16 %v350, %v348
    %v531 = vpack.c.b16 %v351, %v349
    %v532 = vpack.c.b16 %v354, %v352
    %v533 = vpack.c.b16 %v355, %v353
    %v534 = vpack.c.b16 %v358, %v356
    %v535 = vpack.c.b16 %v359, %v357
    %v536 = vpack.c.b16 %v362, %v360
    %v537 = vpack.c.b16 %v363, %v361
    %v538 = vpack.c.b16 %v366, %v364
    %v539 = vpack.c.b16 %v367, %v365
    %v540 = vpack.c.b16 %v370, %v368
    %v541 = vpack.c.b16 %v371, %v369
    %v542 = vpack.c.b16 %v374, %v372
    %v543 = vpack.c.b16 %v375, %v373
    %v544 = vpack.c.b16 %v378, %v376
    %v545 = vpack.c.b16 %v379, %v377
    %v546 = vpack.c.b16 %v382, %v380
    %v547 = vpack.c.b16 %v383, %v381
    %v548 = vpack.c.b16 %v386, %v384
    %v549 = vpack.c.b16 %v387, %v385
    %v550 = vpack.c.b16 %v390, %v388
    %v551 = vpack.c.b16 %v391, %v389
    %v552 = vpack.c.b16 %v394, %v392
    %v553 = vpack.c.b16 %v395, %v393
    %v554 = vpack.c.b16 %v398, %v396
    %v555 = vpack.c.b16 %v399, %v397
    %v556 = vpack.c.b16 %v402, %v400
    %v557 = vpack.c.b16 %v403, %v401
    %v558 = vpack.c.b16 %v406, %v404
    %v559 = vpack.c.b16 %v407, %v405
    %v560 = vpack.c.b16 %v410, %v408
    %v561 = vpack.c.b16 %v411, %v409
    %v562 = vpack.c.b16 %v414, %v412
    %v563 = vpack.c.b16 %v415, %v413
    %v564 = vpack.c.b16 %v418, %v416
    %v565 = vpack.c.b16 %v419, %v417
    %v566 = vpack.c.b16 %v422, %v420
    %v567 = vpack.c.b16 %v423, %v421
    %v568 = vpack.c.b16 %v426, %v424
    %v569 = vpack.c.b16 %v427, %v425
    %v570 = vpack.c.b16 %v430, %v428
    %v571 = vpack.c.b16 %v431, %v429
    %v572 = vpack.c.b16 %v434, %v432
    %v573 = vpack.c.b16 %v435, %v433
    %v574 = vpack.c.b16 %v438, %v436
    %v575 = vpack.c.b16 %v439, %v437
    %v576 = vpack.c.b16 %v442, %v440
    %v577 = vpack.c.b16 %v443, %v441
    %v578 = vpack.c.b16 %v446, %v444
    %v579 = vpack.c.b16 %v447, %v445
    %v580 = vpack.c.b16 %v450, %v448
    %v581 = vpack.c.b16 %v451, %v449
    %v582 = vpack.c.b16 %v454, %v452
    %v583 = vpack.c.b16 %v455, %v453
    %v584 = vpack.c.b16 %v458, %v456
    %v585 = vpack.c.b16 %v459, %v457
    %v586 = vpack.c.b16 %v462, %v460
    %v587 = vpack.c.b16 %v463, %v461
    %v588 = vpack.c.b16 %v466, %v464
    %v589 = vpack.c.b16 %v467, %v465
    %v590 = vpack.c.b16 %v470, %v468
    %v591 = vpack.c.b16 %v471, %v469
    %v592 = vpack.c.b16 %v474, %v472
    %v593 = vpack.c.b16 %v475, %v473
    %v594 = vpack.c.b16 %v478, %v476
    %v595 = vpack.c.b16 %v479, %v477
    %v596 = vpack.c.b16 %v482, %v480
    %v597 = vpack.c.b16 %v483, %v481
    %v598 = vpack.c.b16 %v486, %v484
    %v599 = vpack.c.b16 %v487, %v485
    %v600 = vpack.c.b16 %v490, %v488
    %v601 = vpack.c.b16 %v491, %v489
    %v602 = vpack.c.b16 %v494, %v492
    %v603 = vpack.c.b16 %v495, %v493
    %v604 = vpack.c.b16 %v498, %v496
    %v605 = vpack.c.b16 %v499, %v497
    %v606 = vpack.c.b16 %v502, %v500
    %v607 = vpack.c.b16 %v503, %v501
    %v608 = vpack.c.b16 %v506, %v504
    %v609 = vpack.c.b16 %v507, %v505
    %v610 = vpack.c.b16 %v510, %v508
    %v611 = vpack.c.b16 %v511, %v509
    %v612 = vpack.c.b16 %v514, %v512
    %v613 = vpack.c.b16 %v515, %v513
    %vm712 = vcmask 130048
    %v714 = vsel %vm712, %v56, 0
    %716 = vmatprep.subr.bf16.mxu0 %v517
    %717 = vmatpush1.bf16.msra.mxu0 %v516
    %718 = vmatprep.subr.bf16.mxu0 %v519
    %719 = vmatpush1.bf16.msra.mxu0 %v518
    %720 = vmatprep.subr.bf16.mxu0 %v521
    %721 = vmatpush1.bf16.msra.mxu0 %v520
    %722 = vmatprep.subr.bf16.mxu0 %v523
    %723 = vmatpush1.bf16.msra.mxu0 %v522
    %724 = vmatprep.subr.bf16.mxu0 %v525
    %725 = vmatpush1.bf16.msra.mxu0 %v524
    %726 = vmatprep.subr.bf16.mxu0 %v527
    %727 = vmatpush1.bf16.msra.mxu0 %v526
    %728 = vmatprep.subr.bf16.mxu0 %v529
    %729 = vmatpush1.bf16.msra.mxu0 %v528
    %730 = vmatprep.subr.bf16.mxu0 %v531
    %731 = vmatpush1.bf16.msra.mxu0 %v530
    %732 = vmatprep.subr.bf16.mxu0 %v533
    %733 = vmatpush1.bf16.msra.mxu0 %v532
    %734 = vmatprep.subr.bf16.mxu0 %v535
    %735 = vmatpush1.bf16.msra.mxu0 %v534
    %736 = vmatprep.subr.bf16.mxu0 %v537
    %737 = vmatpush1.bf16.msra.mxu0 %v536
    %738 = vmatprep.subr.bf16.mxu0 %v539
    %739 = vmatpush1.bf16.msra.mxu0 %v538
    %740 = vmatprep.subr.bf16.mxu0 %v541
    %741 = vmatpush1.bf16.msra.mxu0 %v540
    %742 = vmatprep.subr.bf16.mxu0 %v543
    %743 = vmatpush1.bf16.msra.mxu0 %v542
    %744 = vmatprep.subr.bf16.mxu0 %v545
    %745 = vmatpush1.bf16.msra.mxu0 %v544
    %746 = vmatprep.subr.bf16.mxu0 %v547
    %747 = vmatpush1.bf16.msra.mxu0 %v546
    %748 = vmatprep.mubr.bf16.mxu0 %v51
    %749 = vmatmul.mubr.bf16.gmra.mrb[0].mxu0 %v50
    %v750 = vpop.f32.mrb[0].mxu0
    %v751 = vadd.f32 %v214, %v750
    %v752 = vpop.f32.mrb[0].mxu0
    %v753 = vadd.f32 %v216, %v752
    %v754 = vpop.f32.mrb[0].mxu0
    %v755 = vadd.f32 %v218, %v754
    %v756 = vpop.f32.mrb[0].mxu0
    %v757 = vadd.f32 %v220, %v756
    %758 = vdwg.mxu0
    %759 = vmatprep.subr.bf16.mxu0 %v549
    %760 = vmatpush1.bf16.msra.mxu0 %v548
    %761 = vmatprep.subr.bf16.mxu0 %v551
    %762 = vmatpush1.bf16.msra.mxu0 %v550
    %763 = vmatprep.subr.bf16.mxu0 %v553
    %764 = vmatpush1.bf16.msra.mxu0 %v552
    %765 = vmatprep.subr.bf16.mxu0 %v555
    %766 = vmatpush1.bf16.msra.mxu0 %v554
    %767 = vmatprep.subr.bf16.mxu0 %v557
    %768 = vmatpush1.bf16.msra.mxu0 %v556
    %769 = vmatprep.subr.bf16.mxu0 %v559
    %770 = vmatpush1.bf16.msra.mxu0 %v558
    %771 = vmatprep.subr.bf16.mxu0 %v561
    %772 = vmatpush1.bf16.msra.mxu0 %v560
    %773 = vmatprep.subr.bf16.mxu0 %v563
    %774 = vmatpush1.bf16.msra.mxu0 %v562
    %775 = vmatprep.subr.bf16.mxu0 %v565
    %776 = vmatpush1.bf16.msra.mxu0 %v564
    %777 = vmatprep.subr.bf16.mxu0 %v567
    %778 = vmatpush1.bf16.msra.mxu0 %v566
    %779 = vmatprep.subr.bf16.mxu0 %v569
    %780 = vmatpush1.bf16.msra.mxu0 %v568
    %781 = vmatprep.subr.bf16.mxu0 %v571
    %782 = vmatpush1.bf16.msra.mxu0 %v570
    %783 = vmatprep.subr.bf16.mxu0 %v573
    %784 = vmatpush1.bf16.msra.mxu0 %v572
    %785 = vmatprep.subr.bf16.mxu0 %v575
    %786 = vmatpush1.bf16.msra.mxu0 %v574
    %787 = vmatprep.subr.bf16.mxu0 %v577
    %788 = vmatpush1.bf16.msra.mxu0 %v576
    %789 = vmatprep.subr.bf16.mxu0 %v579
    %790 = vmatpush1.bf16.msra.mxu0 %v578
    %791 = vmatprep.mubr.bf16.mxu0 %v53
    %792 = vmatmul.mubr.bf16.gmra.mrb[0].mxu0 %v52
    %v793 = vpop.f32.mrb[0].mxu0
    %v794 = vadd.f32 %v751, %v793
    %v795 = vpop.f32.mrb[0].mxu0
    %v796 = vadd.f32 %v753, %v795
    %v797 = vpop.f32.mrb[0].mxu0
    %v798 = vadd.f32 %v755, %v797
    %v799 = vpop.f32.mrb[0].mxu0
    %v800 = vadd.f32 %v757, %v799
    %801 = vdwg.mxu0
    %802 = vmatprep.subr.bf16.mxu0 %v581
    %803 = vmatpush1.bf16.msra.mxu0 %v580
    %804 = vmatprep.subr.bf16.mxu0 %v583
    %805 = vmatpush1.bf16.msra.mxu0 %v582
    %806 = vmatprep.subr.bf16.mxu0 %v585
    %807 = vmatpush1.bf16.msra.mxu0 %v584
    %808 = vmatprep.subr.bf16.mxu0 %v587
    %809 = vmatpush1.bf16.msra.mxu0 %v586
    %810 = vmatprep.subr.bf16.mxu0 %v589
    %811 = vmatpush1.bf16.msra.mxu0 %v588
    %812 = vmatprep.subr.bf16.mxu0 %v591
    %813 = vmatpush1.bf16.msra.mxu0 %v590
    %814 = vmatprep.subr.bf16.mxu0 %v593
    %815 = vmatpush1.bf16.msra.mxu0 %v592
    %816 = vmatprep.subr.bf16.mxu0 %v595
    %817 = vmatpush1.bf16.msra.mxu0 %v594
    %818 = vmatprep.subr.bf16.mxu0 %v597
    %819 = vmatpush1.bf16.msra.mxu0 %v596
    %820 = vmatprep.subr.bf16.mxu0 %v599
    %821 = vmatpush1.bf16.msra.mxu0 %v598
    %822 = vmatprep.subr.bf16.mxu0 %v601
    %823 = vmatpush1.bf16.msra.mxu0 %v600
    %824 = vmatprep.subr.bf16.mxu0 %v603
    %825 = vmatpush1.bf16.msra.mxu0 %v602
    %826 = vmatprep.subr.bf16.mxu0 %v605
    %827 = vmatpush1.bf16.msra.mxu0 %v604
    %828 = vmatprep.subr.bf16.mxu0 %v607
    %829 = vmatpush1.bf16.msra.mxu0 %v606
    %830 = vmatprep.subr.bf16.mxu0 %v609
    %831 = vmatpush1.bf16.msra.mxu0 %v608
    %832 = vmatprep.subr.bf16.mxu0 %v611
    %833 = vmatpush1.bf16.msra.mxu0 %v610
    %834 = vmatprep.mubr.bf16.mxu0 %v55
    %835 = vmatmul.mubr.bf16.gmra.mrb[0].mxu0 %v54
    %v836 = vpop.f32.mrb[0].mxu0
    %v837 = vadd.f32 %v794, %v836
    %v838 = vpop.f32.mrb[0].mxu0
    %v839 = vadd.f32 %v796, %v838
    %v840 = vpop.f32.mrb[0].mxu0
    %v841 = vadd.f32 %v798, %v840
    %v842 = vpop.f32.mrb[0].mxu0
    %v843 = vadd.f32 %v800, %v842
    %844 = vdwg.mxu0
    %845 = vmatprep.subr.bf16.mxu0 %v613
    %846 = vmatpush1.bf16.msra.mxu0 %v612
    %847 = vmatprep.subr.bf16.mxu0 0
    %848 = vmatpush1.bf16.msra.mxu0 0
    %849 = vmatprep.subr.bf16.mxu0 0
    %850 = vmatpush1.bf16.msra.mxu0 0
    %851 = vmatprep.subr.bf16.mxu0 0
    %852 = vmatpush1.bf16.msra.mxu0 0
    %853 = vmatprep.subr.bf16.mxu0 0
    %854 = vmatpush1.bf16.msra.mxu0 0
    %855 = vmatprep.subr.bf16.mxu0 0
    %856 = vmatpush1.bf16.msra.mxu0 0
    %857 = vmatprep.subr.bf16.mxu0 0
    %858 = vmatpush1.bf16.msra.mxu0 0
    %859 = vmatprep.subr.bf16.mxu0 0
    %860 = vmatpush1.bf16.msra.mxu0 0
    %861 = vmatprep.subr.bf16.mxu0 0
    %862 = vmatpush1.bf16.msra.mxu0 0
    %863 = vmatprep.subr.bf16.mxu0 0
    %864 = vmatpush1.bf16.msra.mxu0 0
    %865 = vmatprep.subr.bf16.mxu0 0
    %866 = vmatpush1.bf16.msra.mxu0 0
    %867 = vmatprep.subr.bf16.mxu0 0
    %868 = vmatpush1.bf16.msra.mxu0 0
    %869 = vmatprep.subr.bf16.mxu0 0
    %870 = vmatpush1.bf16.msra.mxu0 0
    %871 = vmatprep.subr.bf16.mxu0 0
    %872 = vmatpush1.bf16.msra.mxu0 0
    %873 = vmatprep.subr.bf16.mxu0 0
    %874 = vmatpush1.bf16.msra.mxu0 0
    %875 = vmatprep.subr.bf16.mxu0 0
    %876 = vmatpush1.bf16.msra.mxu0 0
    %877 = vmatprep.mubr.bf16.mxu0 0
    %878 = vmatmul.mubr.bf16.gmra.mrb[0].mxu0 %v714
    %v879 = vpop.f32.mrb[0].mxu0
    %v880 = vadd.f32 %v837, %v879
    %v881 = vpop.f32.mrb[0].mxu0
    %v882 = vadd.f32 %v839, %v881
    %v883 = vpop.f32.mrb[0].mxu0
    %v884 = vadd.f32 %v841, %v883
    %v885 = vpop.f32.mrb[0].mxu0
    %v886 = vadd.f32 %v843, %v885
    %887 = vdwg.mxu0
    %v888 = vld [vmem:[%s4] sm:$0x3]
    %v890 = vlaneseq
    %v891 = vshrl.u32 %v890, 7
    %v892 = vsub.s32 0, %v891
    %v893 = vrot.slane %v888, %v892
    %v894 = vlaneseq
    %v895 = vshrl.u32 %v894, 7
    %v896 = vsub.s32 1, %v895
    %v897 = vrot.slane %v888, %v896
    %v900 = vadd.f32 %v880, %v893
    %v901 = vadd.f32 %v882, %v897
    %v902 = vadd.f32 %v884, %v893
    %v903 = vadd.f32 %v886, %v897
    %vm904 = vcmp.ge.f32.partialorder %v900, 0.0
    %vm905 = vcmp.ge.f32.partialorder %v901, 0.0
    %vm906 = vcmp.ge.f32.partialorder %v902, 0.0
    %vm907 = vcmp.ge.f32.partialorder %v903, 0.0
    %v908 = vmul.f32 %v900, 0.02
    %v909 = vmul.f32 %v901, 0.02
    %v910 = vmul.f32 %v902, 0.02
    %v911 = vmul.f32 %v903, 0.02
    %v912 = vsel %vm904, %v900, %v908
    %v913 = vsel %vm905, %v901, %v909
    %v914 = vsel %vm906, %v902, %v910
    %v915 = vsel %vm907, %v903, %v911
    %vm916 = vcmask 588800
    %v917 = vsel %vm916, %v913, 0.0
    %v918 = vadd.f32 %v912, %v917
    %919 = vadd.xlane.f32.xlu0 %v918
    %v920 = vpop.xlane.xlu0 %919
    %v921 = vsel %vm916, %v915, 0.0
    %v922 = vadd.f32 %v914, %v921
    %923 = vadd.xlane.f32.xlu0 %v922
    %v924 = vpop.xlane.xlu0 %923
    %v925 = vrcp.pop 200.0
    %v926 = vmul.f32 %v920, %v925
    %v927 = vmul.f32 %v924, %v925
    %v928 = vmul.f32 %v912, %v912
    %v929 = vmul.f32 %v913, %v913
    %v930 = vmul.f32 %v914, %v914
    %v931 = vmul.f32 %v915, %v915
    %v932 = vsel %vm916, %v929, 0.0
    %v933 = vadd.f32 %v928, %v932
    %934 = vadd.xlane.f32.xlu0 %v933
    %v935 = vpop.xlane.xlu0 %934
    %v936 = vsel %vm916, %v931, 0.0
    %v937 = vadd.f32 %v930, %v936
    %938 = vadd.xlane.f32.xlu0 %v937
    %v939 = vpop.xlane.xlu0 %938
    %v940 = vmul.f32 %v935, %v925
    %v941 = vmul.f32 %v939, %v925
    %v942 = vmul.f32 %v926, %v926
    %v943 = vmul.f32 %v927, %v927
    %v944 = vsub.f32 %v940, %v942
    %v945 = vsub.f32 %v941, %v943
    %v946 = vmax.f32 %v944, 0.0
    %v947 = vmax.f32 %v945, 0.0
    %v948 = vsub.f32 %v912, %v926
    %v949 = vsub.f32 %v913, %v926
    %v950 = vsub.f32 %v914, %v927
    %v951 = vsub.f32 %v915, %v927
    %v952 = vadd.f32 %v946, 1e-05
    %v953 = vadd.f32 %v947, 1e-05
    %v954 = vrsqrt.pop %v952
    %v955 = vrsqrt.pop %v953
    %v956 = vmul.f32 %v948, %v954
    %v957 = vmul.f32 %v949, %v954
    %v958 = vmul.f32 %v950, %v955
    %v959 = vmul.f32 %v951, %v955
    %v960 = vld [vmem:[%s5] sm:$0x3]
    %v962 = vlaneseq
    %v963 = vshrl.u32 %v962, 7
    %v964 = vsub.s32 0, %v963
    %v965 = vrot.slane %v960, %v964
    %v966 = vlaneseq
    %v967 = vshrl.u32 %v966, 7
    %v968 = vsub.s32 1, %v967
    %v969 = vrot.slane %v960, %v968
    %v972 = vmul.f32 %v956, %v965
    %v973 = vmul.f32 %v957, %v969
    %v974 = vmul.f32 %v958, %v965
    %v975 = vmul.f32 %v959, %v969
    %v976 = vld [vmem:[%s6] sm:$0x3]
    %v978 = vlaneseq
    %v979 = vshrl.u32 %v978, 7
    %v980 = vsub.s32 0, %v979
    %v981 = vrot.slane %v976, %v980
    %v982 = vlaneseq
    %v983 = vshrl.u32 %v982, 7
    %v984 = vsub.s32 1, %v983
    %v985 = vrot.slane %v976, %v984
    %v988 = vadd.f32 %v972, %v981
    %v989 = vadd.f32 %v973, %v985
    %v990 = vadd.f32 %v974, %v981
    %v991 = vadd.f32 %v975, %v985
    %v992 = vld [vmem:[%s7] sm:$0x3]
    %v993 = vld [vmem:[#allocation2] sm:$0x1]
    %995 = vset.pattern.permute.xlu0 0
    %996 = vperm.xlu0 %995, %v993
    %v997 = vpop.permute.xlu0 %996
    %v999 = vlaneseq
    %v1000 = vshrl.u32 %v999, 7
    %v1001 = vsub.s32 0, %v1000
    %v1002 = vrot.slane %v997, %v1001
    %v1004 = vlaneseq
    %v1005 = vshrl.u32 %v1004, 7
    %v1006 = vsub.s32 0, %v1005
    %v1007 = vrot.slane %v992, %v1006
    %v1008 = vlaneseq
    %v1009 = vshrl.u32 %v1008, 7
    %v1010 = vsub.s32 1, %v1009
    %v1011 = vrot.slane %v992, %v1010
    %v1013 = vsel %vm916, %v1011, 0
    %v1016 = vsel %vm916, %v989, 0
    %v1019 = vsel %vm916, %v991, 0
    %1021 = vmatprep.subr.mxu0 %v1016
    %1022 = vmatpush1.xpose.msra.mxu0 %v988
    %1023 = vmatprep.subr.mxu0 %v1019
    %1024 = vmatpush1.xpose.msra.mxu0 %v990
    %1025 = vmatprep.subr.mxu0 0.0
    %1026 = vmatpush1.xpose.msra.mxu0 0.0
    %1027 = vmatprep.subr.mxu0 0.0
    %1028 = vmatpush1.xpose.msra.mxu0 0.0
    %1029 = vmatprep.subr.mxu0 0.0
    %1030 = vmatpush1.xpose.msra.mxu0 0.0
    %1031 = vmatprep.subr.mxu0 0.0
    %1032 = vmatpush1.xpose.msra.mxu0 0.0
    %1033 = vmatprep.subr.mxu0 0.0
    %1034 = vmatpush1.xpose.msra.mxu0 0.0
    %1035 = vmatprep.subr.mxu0 0.0
    %1036 = vmatpush1.xpose.msra.mxu0 0.0
    %1037 = vmatprep.subr.mxu0 0.0
    %1038 = vmatpush1.xpose.msra.mxu0 0.0
    %1039 = vmatprep.subr.mxu0 0.0
    %1040 = vmatpush1.xpose.msra.mxu0 0.0
    %1041 = vmatprep.subr.mxu0 0.0
    %1042 = vmatpush1.xpose.msra.mxu0 0.0
    %1043 = vmatprep.subr.mxu0 0.0
    %1044 = vmatpush1.xpose.msra.mxu0 0.0
    %1045 = vmatprep.subr.mxu0 0.0
    %1046 = vmatpush1.xpose.msra.mxu0 0.0
    %1047 = vmatprep.subr.mxu0 0.0
    %1048 = vmatpush1.xpose.msra.mxu0 0.0
    %1049 = vmatprep.subr.mxu0 0.0
    %1050 = vmatpush1.xpose.msra.mxu0 0.0
    %1051 = vmatprep.subr.mxu0 0.0
    %1052 = vmatpush1.xpose.msra.mxu0 0.0
    %1053 = vmatprep.subr.mxu0 0.0
    %1054 = vmatpush1.xpose.msra.mxu0 0.0
    %1055 = vmatprep.subr.mxu0 0.0
    %1056 = vmatpush1.xpose.msra.mxu0 0.0
    %1057 = vmatprep.subr.mxu0 0.0
    %1058 = vmatpush1.xpose.msra.mxu0 0.0
    %1059 = vmatprep.subr.mxu0 0.0
    %1060 = vmatpush1.xpose.msra.mxu0 0.0
    %1061 = vmatprep.subr.mxu0 0.0
    %1062 = vmatpush1.xpose.msra.mxu0 0.0
    %1063 = vmatprep.subr.mxu0 0.0
    %1064 = vmatpush1.xpose.msra.mxu0 0.0
    %1065 = vmatprep.subr.mxu0 0.0
    %1066 = vmatpush1.xpose.msra.mxu0 0.0
    %1067 = vmatprep.subr.mxu0 0.0
    %1068 = vmatpush1.xpose.msra.mxu0 0.0
    %1069 = vmatprep.subr.mxu0 0.0
    %1070 = vmatpush1.xpose.msra.mxu0 0.0
    %1071 = vmatprep.subr.mxu0 0.0
    %1072 = vmatpush1.xpose.msra.mxu0 0.0
    %1073 = vmatprep.subr.mxu0 0.0
    %1074 = vmatpush1.xpose.msra.mxu0 0.0
    %1075 = vmatprep.subr.mxu0 0.0
    %1076 = vmatpush1.xpose.msra.mxu0 0.0
    %1077 = vmatprep.subr.mxu0 0.0
    %1078 = vmatpush1.xpose.msra.mxu0 0.0
    %1079 = vmatprep.subr.mxu0 0.0
    %1080 = vmatpush1.xpose.msra.mxu0 0.0
    %1081 = vmatprep.subr.mxu0 0.0
    %1082 = vmatpush1.xpose.msra.mxu0 0.0
    %1083 = vmatprep.subr.mxu0 0.0
    %1084 = vmatpush1.xpose.msra.mxu0 0.0
    %1085 = vmatprep.mubr.f32.mxu0 %v1013
    %1086 = vmatmul.mubr.f32.gmra.mrb[0].mxu0 %v1007
    %v1087 = vpop.f32.mrb[0].mxu0
    %v1088 = vadd.f32 %v1002, %v1087
    %v1089 = vpop.f32.mrb[0].mxu0
    %1090 = vdwg.mxu0
    %v1091 = vmul.f32 %v1088, 0.5
    %v1092 = vtanh.pop %v1091
    %v1093 = vadd.f32 %v1092, 1.0
    %v1094 = vmul.f32 %v1093, 0.5
    %vm1095 = vcmask 122880
    %1096 = vst.msk [vmem:[#allocation3] sm:$0x1] %vm1095, %v1094
    // Predicated region
    $region38: #{tpu_custom_call.1} parent=1 // pred_check
      _
    $region39: #{tpu_custom_call.1} parent=1 // pred_check_branch
      %1098 = sbr.rel (0) target = $region41
    $region40: #{tpu_custom_call.1} parent=1 // pred_region
      %s1100 = ssub.s32 16, 16
      %1101 = vsyncadd [#allocation4], %s1100
      %s1103 = sshll.u32 [#allocation3], 4
      %s1104 = int_to_ptr.vmem [resolvable:$true] %s1103
      %1106 = dma.vmem_to_hbm [thread:$0]  %s1104, 16, %s9, [#allocation4]
    $region41: #{tpu_custom_call.1} parent=1 // pred_fallthru
      _
    // Predicated region
    $region42: #{tpu_custom_call.1} parent=1 // pred_check
      _
    $region43: #{tpu_custom_call.1} parent=1 // pred_check_branch
      %1108 = sbr.rel (0) target = $region45
    $region44: #{tpu_custom_call.1} parent=1 // pred_region
      %1109 = dma.done [#allocation4], 16
    $region45: #{tpu_custom_call.1} parent=1 // pred_fallthru
      _
    %1110 = vsyncpa [#allocation4], 1

</llo_original>
